<compile_context>
chip_gen: v6e
topology: v6e:2x2x1
jax: 0.10.0
libtpu: 0.0.40
codegen_flags: <defaults>
</compile_context>

<pallas_src>
import math
import functools

import jax
import jax.numpy as jnp
from jax.experimental import pallas as pl
from jax.experimental.pallas import tpu as pltpu


def _silu(v):
    return v * jax.nn.sigmoid(v)


def _round_up(n, m):
    return ((n + m - 1) // m) * m


def _make_step_fuse_kernel(d_actual):
    """Kernel body; d_actual is the *unpadded* model dim (LayerNorm divisor)."""
    inv_d = 1.0 / float(d_actual)
    eps = 1e-5

    def kernel(x_ref, scale_ref, shift_ref, ln_w_ref, ln_b_ref,
               wx_ref, bx_ref, out_ref):
        x = x_ref[0]                                        # (TL, Dp) f32

        # ---- x_layer: LayerNorm(affine) -> SiLU -> Linear ----
        # One-pass stats: padded lanes of x are zero so plain lane sums are
        # exact; divide by the true D.
        s1 = jnp.sum(x, axis=-1, keepdims=True)
        s2 = jnp.sum(x * x, axis=-1, keepdims=True)
        mu = s1 * inv_d
        var = s2 * inv_d - mu * mu
        xn = (x - mu) * jax.lax.rsqrt(var + eps)
        xn = xn * ln_w_ref[...] + ln_b_ref[...]             # padded lanes -> 0
        h = xn * jax.nn.sigmoid(xn)                         # SiLU (f32, VPU/EUP)

        # MXU matmul; wx may be bf16 (cast activations to match), accumulate f32.
        h = (jnp.dot(h.astype(wx_ref.dtype), wx_ref[...],
                     preferred_element_type=jnp.float32)
             + bx_ref[...])                                 # padded cols stay 0

        # ---- LayerNorm (no affine) * (1 + scale) + shift, then residual ----
        t1 = jnp.sum(h, axis=-1, keepdims=True)
        t2 = jnp.sum(h * h, axis=-1, keepdims=True)
        mu_h = t1 * inv_d
        var_h = t2 * inv_d - mu_h * mu_h
        hn = (h - mu_h) * jax.lax.rsqrt(var_h + eps)

        out_ref[0] = x + hn * (1.0 + scale_ref[0]) + shift_ref[0]

    return kernel


def step_fuse_layer(x, t, params, pe, *, tile_l=256, use_bf16_mxu=False):
    """x: (B, L, D) f32, t: (B,) int32, pe: (max_len, D) f32."""
    B, L, D = x.shape

    # ---- hoisted AdaLayerNorm_t.transform (M=1 matmuls: plain JAX glue) ----
    emb = pe[t]                                             # (B, D) gather
    e1 = _silu(emb @ params["w1"] + params["b1"])
    e2 = e1 @ params["w2"] + params["b2"]                   # (B, 2D)
    scale = e2[:, :D]
    shift = e2[:, D:]

    # ---- pad to lane/sublane-friendly shapes ----
    Dp = _round_up(D, 128)                                  # lane-dense
    TL = min(tile_l, _round_up(L, 8))                       # sublane-aligned tile
    Lp = _round_up(L, TL)

    def pad2(a, r, c):
        return jnp.pad(a, ((0, r - a.shape[0]), (0, c - a.shape[1])))

    xp = jnp.pad(x, ((0, 0), (0, Lp - L), (0, Dp - D)))
    scale_p = pad2(scale, B, Dp)[:, None, :]                # (B, 1, Dp)
    shift_p = pad2(shift, B, Dp)[:, None, :]
    ln_w = pad2(params["ln_w"], 1, Dp)                      # padded lanes -> 0
    ln_b = pad2(params["ln_b"], 1, Dp)
    wx = pad2(params["wx"], Dp, Dp)
    bx = pad2(params["bx"], 1, Dp)
    if use_bf16_mxu:
        wx = wx.astype(jnp.bfloat16)                        # halve weight VMEM/HBM

    grid = (B, Lp // TL)

    # ---- VMEM budget (explicit; v7x scoped default is 32 MiB) ----
    wx_bytes = Dp * Dp * wx.dtype.itemsize
    vmem_need = (2 * 2 * TL * Dp * 4        # x + out blocks, double-buffered
                 + 2 * wx_bytes             # wx (double-buffered worst case)
                 + 6 * 8 * Dp * 4 * 2       # small (1, Dp)-ish operands
                 + (2 << 20))               # headroom
    vmem_limit = int(min(max(vmem_need, 32 << 20), 64 << 20))

    cost = pl.CostEstimate(
        flops=2 * B * Lp * Dp * Dp + 12 * B * Lp * Dp,
        transcendentals=B * Lp * Dp,
        bytes_accessed=(2 * B * Lp * Dp * 4 + wx_bytes
                        + 2 * B * Dp * 4 + 4 * Dp * 4),
    )

    kernel = _make_step_fuse_kernel(D)

    out_p = pl.pallas_call(
        kernel,
        out_shape=jax.ShapeDtypeStruct((B, Lp, Dp), x.dtype),
        grid_spec=pltpu.PrefetchScalarGridSpec(
            num_scalar_prefetch=0,
            grid=grid,
            in_specs=[
                pl.BlockSpec((1, TL, Dp), lambda b, l: (b, l, 0)),   # x tile
                pl.BlockSpec((1, 1, Dp), lambda b, l: (b, 0, 0)),    # scale row
                pl.BlockSpec((1, 1, Dp), lambda b, l: (b, 0, 0)),    # shift row
                pl.BlockSpec((1, Dp), lambda b, l: (0, 0)),          # ln_w
                pl.BlockSpec((1, Dp), lambda b, l: (0, 0)),          # ln_b
                pl.BlockSpec((Dp, Dp), lambda b, l: (0, 0)),         # wx
                pl.BlockSpec((1, Dp), lambda b, l: (0, 0)),          # bx
            ],
            out_specs=pl.BlockSpec((1, TL, Dp), lambda b, l: (b, l, 0)),
        ),
        compiler_params=pltpu.CompilerParams(
            dimension_semantics=("parallel", "parallel"),
            vmem_limit_bytes=vmem_limit,
        ),
        cost_estimate=cost,
    )(xp, scale_p, shift_p, ln_w, ln_b, wx, bx)

    return out_p[:, :L, :D]


def make_pe(max_len, d_model):
    pos = jnp.arange(max_len, dtype=jnp.float32)[:, None]
    div = jnp.exp(jnp.arange(0, d_model, 2, dtype=jnp.float32)
                  * -(math.log(10000.0) / d_model))
    pe = jnp.zeros((max_len, d_model), jnp.float32)
    pe = pe.at[:, 0::2].set(jnp.sin(pos * div))
    pe = pe.at[:, 1::2].set(jnp.cos(pos * div))
    return pe


def make_params(key, d_model):
    ks = jax.random.split(key, 8)
    s = 0.05
    return {
        "ln_w": jnp.ones((1, d_model), jnp.float32),
        "ln_b": jnp.zeros((1, d_model), jnp.float32),
        "wx": s * jax.random.normal(ks[0], (d_model, d_model), jnp.float32),
        "bx": s * jax.random.normal(ks[1], (1, d_model), jnp.float32),
        "w1": s * jax.random.normal(ks[2], (d_model, d_model), jnp.float32),
        "b1": s * jax.random.normal(ks[3], (1, d_model), jnp.float32),
        "w2": s * jax.random.normal(ks[4], (d_model, 2 * d_model), jnp.float32),
        "b2": s * jax.random.normal(ks[5], (1, 2 * d_model), jnp.float32),
    }


def reference(x, t, params, pe):
    eps = 1e-5

    def ln(v, w=None, b=None):
        mu = jnp.mean(v, axis=-1, keepdims=True)
        var = jnp.mean((v - mu) ** 2, axis=-1, keepdims=True)
        vn = (v - mu) * jax.lax.rsqrt(var + eps)
        if w is not None:
            vn = vn * w + b
        return vn

    h = _silu(ln(x, params["ln_w"], params["ln_b"])) @ params["wx"] + params["bx"]
    emb = pe[t]
    e2 = _silu(emb @ params["w1"] + params["b1"]) @ params["w2"] + params["b2"]
    D = x.shape[-1]
    scale = e2[:, None, :D]
    shift = e2[:, None, D:]
    return x + ln(h) * (1.0 + scale) + shift


if __name__ == "__main__":
    B, L, D = 2, 8, 32
    key = jax.random.PRNGKey(0)
    kx, kt, kp = jax.random.split(key, 3)

    x = jax.random.normal(kx, (B, L, D), jnp.float32)
    t = jax.random.randint(kt, (B,), 0, 1000, dtype=jnp.int32)
    params = make_params(kp, D)
    pe = make_pe(5000, D)

    ref = reference(x, t, params, pe)

    # f32 MXU path (exact-ish)
    out = step_fuse_layer(x, t, params, pe)
    jax.block_until_ready(out)
    assert out.shape == (B, L, D)
    assert jnp.allclose(out, ref, atol=1e-4, rtol=1e-4)

    # bf16 MXU path (v6e/v7x fast path) — looser tolerance
    out_bf16 = step_fuse_layer(x, t, params, pe, use_bf16_mxu=True)
    jax.block_until_ready(out_bf16)
    assert jnp.allclose(out_bf16, ref, atol=5e-2, rtol=5e-2)

    print("KERNEL_OK")
</pallas_src>

<mosaic_0001>
module attributes {stable_mosaic.version = 11 : i64} {
  func.func @kernel(%arg0: i32, %arg1: i32, %arg2: memref<1x8x128xf32, #tpu.memory_space<vmem>>, %arg3: memref<1x1x128xf32, #tpu.memory_space<vmem>>, %arg4: memref<1x1x128xf32, #tpu.memory_space<vmem>>, %arg5: memref<1x128xf32, #tpu.memory_space<vmem>>, %arg6: memref<1x128xf32, #tpu.memory_space<vmem>>, %arg7: memref<128x128xf32, #tpu.memory_space<vmem>>, %arg8: memref<1x128xf32, #tpu.memory_space<vmem>>, %arg9: memref<1x8x128xf32, #tpu.memory_space<vmem>>) attributes {dimension_semantics = [#tpu.dimension_semantics<parallel>, #tpu.dimension_semantics<parallel>], iteration_bounds = array<i64: 2, 1>, scalar_prefetch = 0 : i64, scratch_operands = 0 : i64, tpu.core_type = #tpu.core_type<tc>, window_params = [{transform_indices = @transform_0, window_bounds = array<i64: 1, 8, 128>}, {transform_indices = @transform_1, window_bounds = array<i64: 1, 1, 128>}, {transform_indices = @transform_2, window_bounds = array<i64: 1, 1, 128>}, {pipeline_mode = #tpu.pipeline_mode<synchronous>, transform_indices = @transform_3, window_bounds = array<i64: 1, 128>}, {pipeline_mode = #tpu.pipeline_mode<synchronous>, transform_indices = @transform_4, window_bounds = array<i64: 1, 128>}, {pipeline_mode = #tpu.pipeline_mode<synchronous>, transform_indices = @transform_5, window_bounds = array<i64: 128, 128>}, {pipeline_mode = #tpu.pipeline_mode<synchronous>, transform_indices = @transform_6, window_bounds = array<i64: 1, 128>}, {transform_indices = @transform_7, window_bounds = array<i64: 1, 8, 128>}]} {
    %c0 = arith.constant 0 : index
    %c0_0 = arith.constant 0 : index
    %c0_1 = arith.constant 0 : index
    %0 = vector.load %arg2[%c0, %c0_0, %c0_1] : memref<1x8x128xf32, #tpu.memory_space<vmem>>, vector<1x8x128xf32>
    %1 = vector.shape_cast %0 : vector<1x8x128xf32> to vector<8x128xf32>
    %cst = arith.constant dense<0.000000e+00> : vector<8xf32>
    %2 = vector.multi_reduction <add>, %1, %cst [1] : vector<8x128xf32> to vector<8xf32>
    %3 = vector.shape_cast %2 : vector<8xf32> to vector<8x1xf32>
    %4 = arith.mulf %1, %1 : vector<8x128xf32>
    %cst_2 = arith.constant dense<0.000000e+00> : vector<8xf32>
    %5 = vector.multi_reduction <add>, %4, %cst_2 [1] : vector<8x128xf32> to vector<8xf32>
    %6 = vector.shape_cast %5 : vector<8xf32> to vector<8x1xf32>
    %cst_3 = arith.constant 3.125000e-02 : f32
    %7 = vector.broadcast %cst_3 : f32 to vector<8x1xf32>
    %8 = arith.mulf %3, %7 : vector<8x1xf32>
    %cst_4 = arith.constant 3.125000e-02 : f32
    %9 = vector.broadcast %cst_4 : f32 to vector<8x1xf32>
    %10 = arith.mulf %6, %9 : vector<8x1xf32>
    %11 = arith.mulf %8, %8 : vector<8x1xf32>
    %12 = arith.subf %10, %11 : vector<8x1xf32>
    %13 = vector.broadcast %8 : vector<8x1xf32> to vector<8x128xf32>
    %14 = arith.subf %1, %13 : vector<8x128xf32>
    %cst_5 = arith.constant 9.99999974E-6 : f32
    %15 = vector.broadcast %cst_5 : f32 to vector<8x1xf32>
    %16 = arith.addf %12, %15 : vector<8x1xf32>
    %17 = math.rsqrt %16 : vector<8x1xf32>
    %18 = vector.broadcast %17 : vector<8x1xf32> to vector<8x128xf32>
    %19 = arith.mulf %14, %18 : vector<8x128xf32>
    %c0_6 = arith.constant 0 : index
    %c0_7 = arith.constant 0 : index
    %20 = vector.load %arg5[%c0_6, %c0_7] : memref<1x128xf32, #tpu.memory_space<vmem>>, vector<1x128xf32>
    %21 = vector.broadcast %20 : vector<1x128xf32> to vector<8x128xf32>
    %22 = arith.mulf %19, %21 : vector<8x128xf32>
    %c0_8 = arith.constant 0 : index
    %c0_9 = arith.constant 0 : index
    %23 = vector.load %arg6[%c0_8, %c0_9] : memref<1x128xf32, #tpu.memory_space<vmem>>, vector<1x128xf32>
    %24 = vector.broadcast %23 : vector<1x128xf32> to vector<8x128xf32>
    %25 = arith.addf %22, %24 : vector<8x128xf32>
    %26 = arith.negf %25 : vector<8x128xf32>
    %27 = math.exp %26 : vector<8x128xf32>
    %cst_10 = arith.constant 1.000000e+00 : f32
    %28 = vector.broadcast %cst_10 : f32 to vector<8x128xf32>
    %29 = arith.addf %28, %27 : vector<8x128xf32>
    %30 = arith.divf %28, %29 : vector<8x128xf32>
    %31 = arith.mulf %25, %30 : vector<8x128xf32>
    %c0_11 = arith.constant 0 : index
    %c0_12 = arith.constant 0 : index
    %32 = vector.load %arg7[%c0_11, %c0_12] : memref<128x128xf32, #tpu.memory_space<vmem>>, vector<128x128xf32>
    %cst_13 = arith.constant dense<0.000000e+00> : vector<8x128xf32>
    %33 = tpu.matmul %31, %32, %cst_13 {dimension_numbers = #tpu.dot_dimension_numbers<[1], [0], [0], [1], [0, 0, 1, 1], [], []>} : vector<8x128xf32>, vector<128x128xf32>, vector<8x128xf32> -> vector<8x128xf32>
    %c0_14 = arith.constant 0 : index
    %c0_15 = arith.constant 0 : index
    %34 = vector.load %arg8[%c0_14, %c0_15] : memref<1x128xf32, #tpu.memory_space<vmem>>, vector<1x128xf32>
    %35 = vector.broadcast %34 : vector<1x128xf32> to vector<8x128xf32>
    %36 = arith.addf %33, %35 : vector<8x128xf32>
    %cst_16 = arith.constant dense<0.000000e+00> : vector<8xf32>
    %37 = vector.multi_reduction <add>, %36, %cst_16 [1] : vector<8x128xf32> to vector<8xf32>
    %38 = vector.shape_cast %37 : vector<8xf32> to vector<8x1xf32>
    %39 = arith.mulf %36, %36 : vector<8x128xf32>
    %cst_17 = arith.constant dense<0.000000e+00> : vector<8xf32>
    %40 = vector.multi_reduction <add>, %39, %cst_17 [1] : vector<8x128xf32> to vector<8xf32>
    %41 = vector.shape_cast %40 : vector<8xf32> to vector<8x1xf32>
    %cst_18 = arith.constant 3.125000e-02 : f32
    %42 = vector.broadcast %cst_18 : f32 to vector<8x1xf32>
    %43 = arith.mulf %38, %42 : vector<8x1xf32>
    %cst_19 = arith.constant 3.125000e-02 : f32
    %44 = vector.broadcast %cst_19 : f32 to vector<8x1xf32>
    %45 = arith.mulf %41, %44 : vector<8x1xf32>
    %46 = arith.mulf %43, %43 : vector<8x1xf32>
    %47 = arith.subf %45, %46 : vector<8x1xf32>
    %48 = vector.broadcast %43 : vector<8x1xf32> to vector<8x128xf32>
    %49 = arith.subf %36, %48 : vector<8x128xf32>
    %cst_20 = arith.constant 9.99999974E-6 : f32
    %50 = vector.broadcast %cst_20 : f32 to vector<8x1xf32>
    %51 = arith.addf %47, %50 : vector<8x1xf32>
    %52 = math.rsqrt %51 : vector<8x1xf32>
    %53 = vector.broadcast %52 : vector<8x1xf32> to vector<8x128xf32>
    %54 = arith.mulf %49, %53 : vector<8x128xf32>
    %c0_21 = arith.constant 0 : index
    %c0_22 = arith.constant 0 : index
    %c0_23 = arith.constant 0 : index
    %55 = vector.load %arg3[%c0_21, %c0_22, %c0_23] : memref<1x1x128xf32, #tpu.memory_space<vmem>>, vector<1x1x128xf32>
    %56 = vector.shape_cast %55 : vector<1x1x128xf32> to vector<1x128xf32>
    %cst_24 = arith.constant 1.000000e+00 : f32
    %57 = vector.broadcast %cst_24 : f32 to vector<1x128xf32>
    %58 = arith.addf %57, %56 : vector<1x128xf32>
    %59 = vector.broadcast %58 : vector<1x128xf32> to vector<8x128xf32>
    %60 = arith.mulf %54, %59 : vector<8x128xf32>
    %61 = arith.addf %1, %60 : vector<8x128xf32>
    %c0_25 = arith.constant 0 : index
    %c0_26 = arith.constant 0 : index
    %c0_27 = arith.constant 0 : index
    %62 = vector.load %arg4[%c0_25, %c0_26, %c0_27] : memref<1x1x128xf32, #tpu.memory_space<vmem>>, vector<1x1x128xf32>
    %63 = vector.shape_cast %62 : vector<1x1x128xf32> to vector<1x128xf32>
    %64 = vector.broadcast %63 : vector<1x128xf32> to vector<8x128xf32>
    %65 = arith.addf %61, %64 : vector<8x128xf32>
    %c0_28 = arith.constant 0 : index
    %c0_29 = arith.constant 0 : index
    %c0_30 = arith.constant 0 : index
    %66 = vector.load %arg9[%c0_28, %c0_29, %c0_30] : memref<1x8x128xf32, #tpu.memory_space<vmem>>, vector<1x8x128xf32>
    %67 = vector.shape_cast %66 : vector<1x8x128xf32> to vector<8x128xf32>
    %68 = vector.shape_cast %65 : vector<8x128xf32> to vector<1x8x128xf32>
    tpu.vector_store %arg9[%c0_28, %c0_29, %c0_30], %68 {strides = array<i32>} : memref<1x8x128xf32, #tpu.memory_space<vmem>>, vector<1x8x128xf32>,
    return
  }
  func.func @transform_0(%arg0: i32, %arg1: i32) -> (i32, i32, i32) {
    %c0_i32 = arith.constant 0 : i32
    %c0_i32_0 = arith.constant 0 : i32
    return %arg0, %arg1, %c0_i32 : i32, i32, i32
  }
  func.func @transform_1(%arg0: i32, %arg1: i32) -> (i32, i32, i32) {
    %c0_i32 = arith.constant 0 : i32
    %c0_i32_0 = arith.constant 0 : i32
    %c0_i32_1 = arith.constant 0 : i32
    return %arg0, %c0_i32, %c0_i32_0 : i32, i32, i32
  }
  func.func @transform_2(%arg0: i32, %arg1: i32) -> (i32, i32, i32) {
    %c0_i32 = arith.constant 0 : i32
    %c0_i32_0 = arith.constant 0 : i32
    %c0_i32_1 = arith.constant 0 : i32
    return %arg0, %c0_i32, %c0_i32_0 : i32, i32, i32
  }
  func.func @transform_3(%arg0: i32, %arg1: i32) -> (i32, i32) {
    %c0_i32 = arith.constant 0 : i32
    %c0_i32_0 = arith.constant 0 : i32
    %c0_i32_1 = arith.constant 0 : i32
    return %c0_i32, %c0_i32_0 : i32, i32
  }
  func.func @transform_4(%arg0: i32, %arg1: i32) -> (i32, i32) {
    %c0_i32 = arith.constant 0 : i32
    %c0_i32_0 = arith.constant 0 : i32
    %c0_i32_1 = arith.constant 0 : i32
    return %c0_i32, %c0_i32_0 : i32, i32
  }
  func.func @transform_5(%arg0: i32, %arg1: i32) -> (i32, i32) {
    %c0_i32 = arith.constant 0 : i32
    %c0_i32_0 = arith.constant 0 : i32
    %c0_i32_1 = arith.constant 0 : i32
    return %c0_i32, %c0_i32_0 : i32, i32
  }
  func.func @transform_6(%arg0: i32, %arg1: i32) -> (i32, i32) {
    %c0_i32 = arith.constant 0 : i32
    %c0_i32_0 = arith.constant 0 : i32
    %c0_i32_1 = arith.constant 0 : i32
    return %c0_i32, %c0_i32_0 : i32, i32
  }
  func.func @transform_7(%arg0: i32, %arg1: i32) -> (i32, i32, i32) {
    %c0_i32 = arith.constant 0 : i32
    %c0_i32_0 = arith.constant 0 : i32
    return %arg0, %arg1, %c0_i32 : i32, i32, i32
  }
}

</mosaic_0001>

<llo_original>
// kernel: tpu_custom_call.1
$region0: #{tpu_custom_call.1}
  #allocation0 [shape = 'u32[]', space=smem, size = 0x4, offset = 0x4, fixed_abs, tag = 'smem constant byte address 0x4 - core index']
  #allocation1 [shape = 'u32[144,128]{1,0:T(1,128)}', space=vmem, size = 0x12000, scoped, tag = 'internal scratch']
  %s0 = inlined_call_operand.hbm [shape: f32[2,8,128], index: 0, kind: input, shape index: {}]
  %s1 = inlined_call_operand.hbm [shape: f32[2,1,128], index: 1, kind: input, shape index: {}]
  %s2 = inlined_call_operand.vmem [shape: f32[2,1,128], index: 2, kind: input, shape index: {}]
  %s3 = inlined_call_operand.vmem [shape: f32[1,128], index: 3, kind: input, shape index: {}]
  %s4 = inlined_call_operand.vmem [shape: f32[1,128], index: 4, kind: input, shape index: {}]
  %s5 = inlined_call_operand.hbm [shape: f32[128,128], index: 5, kind: input, shape index: {}]
  %s6 = inlined_call_operand.vmem [shape: f32[1,128], index: 6, kind: input, shape index: {}]
  %s7 = inlined_call_operand.hbm [shape: f32[2,8,128], index: 7, kind: output, shape index: {}]
  %s8 = sld [smem:[#allocation0]]
  $region73: #{tpu_custom_call.1} parent=0
    _
  %s10 = ssub.s32 1, %s8
  %s11 = scalar_select 0, %s10, %s8
  $region1: #{tpu_custom_call.1} parent=0
    #allocation2 [shape = 'u8[8192]{0}', space=vmem, size = 0x2000, scoped, tag = 'input window, operand 0']
    #allocation3 [shape = 's32[2]{0}', space=sflag, size = 0x8, scoped, tag = 'scoped memory for tpu_custom_call.1']
    #allocation4 [shape = 's32[2]{0}', space=sflag, size = 0x8, scoped, tag = 'scoped memory for tpu_custom_call.1']
    #allocation5 [shape = 'u8[1024]{0}', space=vmem, size = 0x400, scoped, tag = 'input window, operand 1']
    #allocation6 [shape = 's32[2]{0}', space=sflag, size = 0x8, scoped, tag = 'scoped memory for tpu_custom_call.1']
    #allocation7 [shape = 'u8[65536]{0}', space=vmem, size = 0x10000, scoped, tag = 'input window, operand 5, single buffered']
    #allocation8 [shape = 'u8[8192]{0}', space=vmem, size = 0x2000, scoped, tag = 'output window, operand 0']
    %12 = vsyncpa [#allocation3], 0
    %s13 = scalar_lea.sflag [#allocation3], 1
    %14 = vsyncpa %s13, 0
    %15 = vsyncpa [#allocation6], 0
    %s16 = scalar_lea.sflag [#allocation6], 1
    %17 = vsyncpa %s16, 0
    %18 = vsyncpa [#allocation4], 0
    %s19 = scalar_lea.sflag [#allocation4], 1
    %20 = vsyncpa %s19, 0
    loop: start=0, step=1, limit=4
    $region2: #{tpu_custom_call.1} parent=1 // loop_pre_header
      _
    $region3: #{tpu_custom_call.1} parent=1 // loop_header
      %s22 = sphi 0, %s26
      %p23 = scmp.ge.s32.totalorder %s22, 4
      %s29 = sphi 0, %s41
      %s30 = sphi 0, %s37
      %s31 = sphi 0, %s29
      %s32 = sphi 0, %s30
      %s33 = sphi 0, %s31
      %s34 = sphi 0, %s32
      %s46 = sphi 0, %s48
      %s49 = sphi 0, %s46
      %s50 = sphi 0, %s49
      %s66 = sphi 0, %s50
      %s72 = sphi 0, %s74
      %s75 = sphi 0, %s72
      %s76 = sphi 0, %s75
      %s92 = sphi 0, %s76
      %s98 = sphi 0, %s100
      %s101 = sphi 0, %s98
      %s102 = sphi 0, %s101
      %s118 = sphi 0, %s102
      %s122 = sphi 0, %s122
      %s124 = sphi 0, %s122
      %s125 = sphi 0, %s124
      %s139 = sphi 0, %s125
      %s143 = sphi 0, %s143
      %s145 = sphi 0, %s143
      %s146 = sphi 0, %s145
      %s160 = sphi 0, %s146
      %s164 = sphi 0, %s164
      %s166 = sphi 0, %s164
      %s167 = sphi 0, %s166
      %s181 = sphi 0, %s167
      %s185 = sphi 0, %s185
      %s187 = sphi 0, %s185
      %s188 = sphi 0, %s187
      %s202 = sphi 0, %s188
      %s210 = sphi 0, %s212
      %s213 = sphi 0, %s210
      %s214 = sphi 0, %s213
      %s230 = sphi 0, %s214
    $region4: #{tpu_custom_call.1} parent=1 // loop_header_branch
      %25 = sbr.rel (%p23) target = $region8
    $region5: #{tpu_custom_call.1} parent=1 // loop_body
      %s27 = ssub.s32 %s22, 1
      %s28 = ssub.s32 %s22, 2
      %s35 = sadd.s32 1, %s30
      %p36 = scmp.ge.s32.totalorder %s35, 1
      %s37 = scalar_select %p36, 0, %s35
      %s38 = sadd.s32 1, %s29
      %s39 = scalar_select %p36, %s38, %s29
      %p40 = scmp.ge.s32.totalorder %s39, 2
      %s41 = scalar_select %p40, 0, %s39
      %s42 = ssub.s32 %s29, %s41
      %s43 = ssub.s32 %s30, %s37
      %s44 = sor.u32 %s42, %s43
      %p45 = scmp.eq.s32.totalorder %s44, 0
      %s47 = sadd.s32 %s46, 1
      %s48 = scalar_select %p45, %s46, %s47
      %p51 = pneg %p45
      %p52 = scmp.eq.s32.totalorder %s22, 1
      %p53 = por %p51, %p52
      %p54 = scmp.ne.s32.totalorder %s46, %s49
      %p55 = scmp.eq.s32.totalorder %s22, 0
      %p56 = por %p54, %p55
      %p57 = scmp.ne.s32.totalorder %s46, %s49
      %p58 = scmp.eq.s32.totalorder %s27, 1
      %p59 = por %p57, %p58
      %p60 = scmp.ne.s32.totalorder %s49, %s50
      %p61 = scmp.eq.s32.totalorder %s27, 0
      %p62 = por %p60, %p61
      %p63 = scmp.ne.s32.totalorder %s49, %s50
      %p64 = scmp.eq.s32.totalorder %s28, 1
      %p65 = por %p63, %p64
      %p67 = scmp.ne.s32.totalorder %s50, %s66
      %p68 = scmp.eq.s32.totalorder %s28, 0
      %p69 = por %p67, %p68
      %s70 = ssub.s32 %s29, %s41
      %p71 = scmp.eq.s32.totalorder %s70, 0
      %s73 = sadd.s32 %s72, 1
      %s74 = scalar_select %p71, %s72, %s73
      %p77 = pneg %p71
      %p78 = scmp.eq.s32.totalorder %s22, 1
      %p79 = por %p77, %p78
      %p80 = scmp.ne.s32.totalorder %s72, %s75
      %p81 = scmp.eq.s32.totalorder %s22, 0
      %p82 = por %p80, %p81
      %p83 = scmp.ne.s32.totalorder %s72, %s75
      %p84 = scmp.eq.s32.totalorder %s27, 1
      %p85 = por %p83, %p84
      %p86 = scmp.ne.s32.totalorder %s75, %s76
      %p87 = scmp.eq.s32.totalorder %s27, 0
      %p88 = por %p86, %p87
      %p89 = scmp.ne.s32.totalorder %s75, %s76
      %p90 = scmp.eq.s32.totalorder %s28, 1
      %p91 = por %p89, %p90
      %p93 = scmp.ne.s32.totalorder %s76, %s92
      %p94 = scmp.eq.s32.totalorder %s28, 0
      %p95 = por %p93, %p94
      %s96 = ssub.s32 %s29, %s41
      %p97 = scmp.eq.s32.totalorder %s96, 0
      %s99 = sadd.s32 %s98, 1
      %s100 = scalar_select %p97, %s98, %s99
      %p103 = pneg %p97
      %p104 = scmp.eq.s32.totalorder %s22, 1
      %p105 = por %p103, %p104
      %p106 = scmp.ne.s32.totalorder %s98, %s101
      %p107 = scmp.eq.s32.totalorder %s22, 0
      %p108 = por %p106, %p107
      %p109 = scmp.ne.s32.totalorder %s98, %s101
      %p110 = scmp.eq.s32.totalorder %s27, 1
      %p111 = por %p109, %p110
      %p112 = scmp.ne.s32.totalorder %s101, %s102
      %p113 = scmp.eq.s32.totalorder %s27, 0
      %p114 = por %p112, %p113
      %p115 = scmp.ne.s32.totalorder %s101, %s102
      %p116 = scmp.eq.s32.totalorder %s28, 1
      %p117 = por %p115, %p116
      %p119 = scmp.ne.s32.totalorder %s102, %s118
      %p120 = scmp.eq.s32.totalorder %s28, 0
      %p121 = por %p119, %p120
      %s123 = sadd.s32 %s122, 1
      %p126 = scmp.eq.s32.totalorder %s22, 1
      %p127 = scmp.ne.s32.totalorder %s122, %s124
      %p128 = scmp.eq.s32.totalorder %s22, 0
      %p129 = por %p127, %p128
      %p130 = scmp.ne.s32.totalorder %s122, %s124
      %p131 = scmp.eq.s32.totalorder %s27, 1
      %p132 = por %p130, %p131
      %p133 = scmp.ne.s32.totalorder %s124, %s125
      %p134 = scmp.eq.s32.totalorder %s27, 0
      %p135 = por %p133, %p134
      %p136 = scmp.ne.s32.totalorder %s124, %s125
      %p137 = scmp.eq.s32.totalorder %s28, 1
      %p138 = por %p136, %p137
      %p140 = scmp.ne.s32.totalorder %s125, %s139
      %p141 = scmp.eq.s32.totalorder %s28, 0
      %p142 = por %p140, %p141
      %s144 = sadd.s32 %s143, 1
      %p147 = scmp.eq.s32.totalorder %s22, 1
      %p148 = scmp.ne.s32.totalorder %s143, %s145
      %p149 = scmp.eq.s32.totalorder %s22, 0
      %p150 = por %p148, %p149
      %p151 = scmp.ne.s32.totalorder %s143, %s145
      %p152 = scmp.eq.s32.totalorder %s27, 1
      %p153 = por %p151, %p152
      %p154 = scmp.ne.s32.totalorder %s145, %s146
      %p155 = scmp.eq.s32.totalorder %s27, 0
      %p156 = por %p154, %p155
      %p157 = scmp.ne.s32.totalorder %s145, %s146
      %p158 = scmp.eq.s32.totalorder %s28, 1
      %p159 = por %p157, %p158
      %p161 = scmp.ne.s32.totalorder %s146, %s160
      %p162 = scmp.eq.s32.totalorder %s28, 0
      %p163 = por %p161, %p162
      %s165 = sadd.s32 %s164, 1
      %p168 = scmp.eq.s32.totalorder %s22, 1
      %p169 = scmp.ne.s32.totalorder %s164, %s166
      %p170 = scmp.eq.s32.totalorder %s22, 0
      %p171 = por %p169, %p170
      %p172 = scmp.ne.s32.totalorder %s164, %s166
      %p173 = scmp.eq.s32.totalorder %s27, 1
      %p174 = por %p172, %p173
      %p175 = scmp.ne.s32.totalorder %s166, %s167
      %p176 = scmp.eq.s32.totalorder %s27, 0
      %p177 = por %p175, %p176
      %p178 = scmp.ne.s32.totalorder %s166, %s167
      %p179 = scmp.eq.s32.totalorder %s28, 1
      %p180 = por %p178, %p179
      %p182 = scmp.ne.s32.totalorder %s167, %s181
      %p183 = scmp.eq.s32.totalorder %s28, 0
      %p184 = por %p182, %p183
      %s186 = sadd.s32 %s185, 1
      %p189 = scmp.eq.s32.totalorder %s22, 1
      %p190 = scmp.ne.s32.totalorder %s185, %s187
      %p191 = scmp.eq.s32.totalorder %s22, 0
      %p192 = por %p190, %p191
      %p193 = scmp.ne.s32.totalorder %s185, %s187
      %p194 = scmp.eq.s32.totalorder %s27, 1
      %p195 = por %p193, %p194
      %p196 = scmp.ne.s32.totalorder %s187, %s188
      %p197 = scmp.eq.s32.totalorder %s27, 0
      %p198 = por %p196, %p197
      %p199 = scmp.ne.s32.totalorder %s187, %s188
      %p200 = scmp.eq.s32.totalorder %s28, 1
      %p201 = por %p199, %p200
      %p203 = scmp.ne.s32.totalorder %s188, %s202
      %p204 = scmp.eq.s32.totalorder %s28, 0
      %p205 = por %p203, %p204
      %s206 = ssub.s32 %s29, %s41
      %s207 = ssub.s32 %s30, %s37
      %s208 = sor.u32 %s206, %s207
      %p209 = scmp.eq.s32.totalorder %s208, 0
      %s211 = sadd.s32 %s210, 1
      %s212 = scalar_select %p209, %s210, %s211
      %p215 = pneg %p209
      %p216 = scmp.eq.s32.totalorder %s22, 1
      %p217 = por %p215, %p216
      %p218 = scmp.ne.s32.totalorder %s210, %s213
      %p219 = scmp.eq.s32.totalorder %s22, 0
      %p220 = por %p218, %p219
      %p221 = scmp.ne.s32.totalorder %s210, %s213
      %p222 = scmp.eq.s32.totalorder %s27, 1
      %p223 = por %p221, %p222
      %p224 = scmp.ne.s32.totalorder %s213, %s214
      %p225 = scmp.eq.s32.totalorder %s27, 0
      %p226 = por %p224, %p225
      %p227 = scmp.ne.s32.totalorder %s213, %s214
      %p228 = scmp.eq.s32.totalorder %s28, 1
      %p229 = por %p227, %p228
      %p231 = scmp.ne.s32.totalorder %s214, %s230
      %p232 = scmp.eq.s32.totalorder %s28, 0
      %p233 = por %p231, %p232
      %p234 = scmp.le.s32.totalorder 1, %s22
      %p235 = scmp.lt.s32.totalorder %s22, 3
      %p236 = pnand %p234, %p235
      %p237 = pneg %p236
      // Predicated region
      $region9: #{tpu_custom_call.1} parent=5 // pred_check
        _
      $region10: #{tpu_custom_call.1} parent=5 // pred_check_branch
        %239 = sbr.rel (%p236) target = $region12
      $region11: #{tpu_custom_call.1} parent=5 // pred_region
        %s240 = ssub.s32 %s22, 1
        // Predicated region
        $region13: #{tpu_custom_call.1} parent=11 // pred_check
          %p241 = pneg %p135
        $region14: #{tpu_custom_call.1} parent=11 // pred_check_branch
          %243 = sbr.rel (%p241) target = $region16
        $region15: #{tpu_custom_call.1} parent=11 // pred_region
          _
        $region16: #{tpu_custom_call.1} parent=11 // pred_fallthru
          _
        // Predicated region
        $region17: #{tpu_custom_call.1} parent=11 // pred_check
          %p244 = pneg %p156
        $region18: #{tpu_custom_call.1} parent=11 // pred_check_branch
          %246 = sbr.rel (%p244) target = $region20
        $region19: #{tpu_custom_call.1} parent=11 // pred_region
          _
        $region20: #{tpu_custom_call.1} parent=11 // pred_fallthru
          _
        // Predicated region
        $region21: #{tpu_custom_call.1} parent=11 // pred_check
          %p247 = pneg %p177
        $region22: #{tpu_custom_call.1} parent=11 // pred_check_branch
          %249 = sbr.rel (%p247) target = $region24
        $region23: #{tpu_custom_call.1} parent=11 // pred_region
          %s251 = ssub.s32 2048, 2048
          %252 = vsyncadd [#allocation6], %s251
          %s253 = sshll.u32 [#allocation7], 4
          %s254 = int_to_ptr.vmem [resolvable:$true] %s253
          %259 = dma.hbm_to_vmem [thread:$0]  %s5, 2048, %s254, [#allocation6], 128, 128, 8
        $region24: #{tpu_custom_call.1} parent=11 // pred_fallthru
          _
        // Predicated region
        $region25: #{tpu_custom_call.1} parent=11 // pred_check
          %p260 = pneg %p198
        $region26: #{tpu_custom_call.1} parent=11 // pred_check_branch
          %262 = sbr.rel (%p260) target = $region28
        $region27: #{tpu_custom_call.1} parent=11 // pred_region
          _
        $region28: #{tpu_custom_call.1} parent=11 // pred_fallthru
          _
      $region12: #{tpu_custom_call.1} parent=5 // pred_fallthru
        _
      %p263 = scmp.lt.s32.totalorder %s22, 2
      // Predicated region
      $region29: #{tpu_custom_call.1} parent=5 // pred_check
        %p264 = pneg %p263
      $region30: #{tpu_custom_call.1} parent=5 // pred_check_branch
        %266 = sbr.rel (%p264) target = $region32
      $region31: #{tpu_custom_call.1} parent=5 // pred_region
        // Predicated region
        $region33: #{tpu_custom_call.1} parent=31 // pred_check
          %p267 = pneg %p56
        $region34: #{tpu_custom_call.1} parent=31 // pred_check_branch
          %269 = sbr.rel (%p267) target = $region36
        $region35: #{tpu_custom_call.1} parent=31 // pred_region
          %s270 = sand.u32 %s46, 1
          %s271 = scalar_lea.sflag [#allocation3], %s270
          %s272 = sand.u32 %s46, 1
          %s273 = smul.addr %s272, 8
          %s274 = scalar_lea.vmem [#allocation2], %s273
          %s276 = ssub.s32 128, 128
          %277 = vsyncadd %s271, %s276
          %s278 = sadd.s32 %s30, %s29
          %s279 = smul.addr %s278, 128
          %s280 = scalar_lea.hbm %s0, %s279
          %s282 = sshll.u32 %s274, 4
          %s283 = int_to_ptr.vmem [resolvable:$true] %s282
          %285 = dma.hbm_to_vmem [thread:$0]  %s280, 128, %s283, %s271
        $region36: #{tpu_custom_call.1} parent=31 // pred_fallthru
          _
        // Predicated region
        $region37: #{tpu_custom_call.1} parent=31 // pred_check
          %p286 = pneg %p82
        $region38: #{tpu_custom_call.1} parent=31 // pred_check_branch
          %288 = sbr.rel (%p286) target = $region40
        $region39: #{tpu_custom_call.1} parent=31 // pred_region
          %s289 = sand.u32 %s22, 1
          %s290 = scalar_lea.sflag [#allocation6], %s289
          %s291 = sand.u32 %s72, 1
          %s292 = scalar_lea.vmem [#allocation5], %s291
          %s294 = ssub.s32 16, 16
          %295 = vsyncadd %s290, %s294
          %s296 = smul.addr %s29, 16
          %s297 = scalar_lea.hbm %s1, %s296
          %s299 = sshll.u32 %s292, 4
          %s300 = int_to_ptr.vmem [resolvable:$true] %s299
          %302 = dma.hbm_to_vmem [thread:$0]  %s297, 16, %s300, %s290
        $region40: #{tpu_custom_call.1} parent=31 // pred_fallthru
          _
        // Predicated region
        $region41: #{tpu_custom_call.1} parent=31 // pred_check
          %p303 = pneg %p108
        $region42: #{tpu_custom_call.1} parent=31 // pred_check_branch
          %305 = sbr.rel (%p303) target = $region44
        $region43: #{tpu_custom_call.1} parent=31 // pred_region
          %p306 = scmp.lt.s32.totalorder %s29, 1
          %s307 = scalar_select %p306, %s29, 1
          %s308 = scalar_lea.vmem %s2, %s307
        $region44: #{tpu_custom_call.1} parent=31 // pred_fallthru
          _
      $region32: #{tpu_custom_call.1} parent=5 // pred_fallthru
        _
      %p309 = scmp.le.s32.totalorder 1, %s22
      %p310 = scmp.lt.s32.totalorder %s22, 3
      %p311 = pnand %p309, %p310
      %p312 = pneg %p311
      // Predicated region
      $region45: #{tpu_custom_call.1} parent=5 // pred_check
        _
      $region46: #{tpu_custom_call.1} parent=5 // pred_check_branch
        %314 = sbr.rel (%p311) target = $region48
      $region47: #{tpu_custom_call.1} parent=5 // pred_region
        %s315 = ssub.s32 %s22, 1
        %s316 = sand.u32 %s49, 1
        %s317 = scalar_lea.sflag [#allocation3], %s316
        %s318 = sand.u32 %s49, 1
        %s319 = smul.addr %s318, 8
        %s320 = scalar_lea.vmem [#allocation2], %s319
        // Predicated region
        $region49: #{tpu_custom_call.1} parent=47 // pred_check
          %p321 = pneg %p62
        $region50: #{tpu_custom_call.1} parent=47 // pred_check_branch
          %323 = sbr.rel (%p321) target = $region52
        $region51: #{tpu_custom_call.1} parent=47 // pred_region
          %324 = dma.done %s317, 128
        $region52: #{tpu_custom_call.1} parent=47 // pred_fallthru
          _
        %s325 = sand.u32 %s27, 1
        %s326 = scalar_lea.sflag [#allocation6], %s325
        %s327 = sand.u32 %s75, 1
        %s328 = scalar_lea.vmem [#allocation5], %s327
        // Predicated region
        $region53: #{tpu_custom_call.1} parent=47 // pred_check
          %p329 = pneg %p88
        $region54: #{tpu_custom_call.1} parent=47 // pred_check_branch
          %331 = sbr.rel (%p329) target = $region56
        $region55: #{tpu_custom_call.1} parent=47 // pred_region
          %332 = dma.done %s326, 16
        $region56: #{tpu_custom_call.1} parent=47 // pred_fallthru
          _
        // Predicated region
        $region57: #{tpu_custom_call.1} parent=47 // pred_check
          %p333 = pneg %p177
        $region58: #{tpu_custom_call.1} parent=47 // pred_check_branch
          %335 = sbr.rel (%p333) target = $region60
        $region59: #{tpu_custom_call.1} parent=47 // pred_region
          %336 = dma.done [#allocation6], 2048
        $region60: #{tpu_custom_call.1} parent=47 // pred_fallthru
          _
        %s337 = sand.u32 %s49, 1
        %s338 = scalar_lea.sflag [#allocation3], %s337
        %s339 = sand.u32 %s49, 1
        %s340 = smul.addr %s339, 8
        %s341 = scalar_lea.vmem [#allocation2], %s340
        %p342 = pneg %p62
        %p343 = pneg %p59
        %s344 = sand.u32 %s27, 1
        %s345 = scalar_lea.sflag [#allocation6], %s344
        %s346 = sand.u32 %s75, 1
        %s347 = scalar_lea.vmem [#allocation5], %s346
        %p348 = pneg %p88
        %p349 = pneg %p85
        %p350 = scmp.lt.s32.totalorder %s31, 1
        %s351 = scalar_select %p350, %s31, 1
        %s352 = scalar_lea.vmem %s2, %s351
        %p353 = pneg %p114
        %p354 = pneg %p111
        %p355 = pneg %p135
        %p356 = pneg %p132
        %p357 = pneg %p156
        %p358 = pneg %p153
        %p359 = pneg %p177
        %p360 = pneg %p174
        %p361 = pneg %p198
        %p362 = pneg %p195
        %p363 = pneg %p226
        %p364 = pneg %p223
        %s365 = sand.u32 %s213, 1
        %s366 = scalar_lea.sflag [#allocation4], %s365
        %s367 = sand.u32 %s213, 1
        %s368 = smul.addr %s367, 8
        %s369 = scalar_lea.vmem [#allocation8], %s368
        %p370 = scmp.lt.s32.totalorder %s31, 1
        %s371 = scalar_select %p370, %s31, 1
        %s372 = scalar_lea.vmem %s2, %s371
        %v373 = vld [vmem:[%s320] sm:$0xff]
        %374 = vadd.xlane.f32.xlu0 %v373
        %v375 = vpop.xlane.xlu0 %374
        %v376 = vmul.f32 %v373, %v373
        %377 = vadd.xlane.f32.xlu0 %v376
        %v378 = vpop.xlane.xlu0 %377
        %v379 = vmul.f32 %v375, 0.03125
        %v380 = vmul.f32 %v378, 0.03125
        %v381 = vmul.f32 %v379, %v379
        %v382 = vsub.f32 %v380, %v381
        %v383 = vsub.f32 %v373, %v379
        %v384 = vadd.f32 %v382, 1e-05
        %v385 = vrsqrt.pop %v384
        %v386 = vmul.f32 %v383, %v385
        %v387 = vld [vmem:[%s3] sm:$0x1]
        %v389 = vlaneseq
        %v390 = vshrl.u32 %v389, 7
        %v391 = vsub.s32 0, %v390
        %v392 = vrot.slane %v387, %v391
        %v394 = vmul.f32 %v386, %v392
        %v395 = vld [vmem:[%s4] sm:$0x1]
        %v397 = vlaneseq
        %v398 = vshrl.u32 %v397, 7
        %v399 = vsub.s32 0, %v398
        %v400 = vrot.slane %v395, %v399
        %v402 = vadd.f32 %v394, %v400
        %v403 = vxor.u32 %v402, 2147483648
        %v404 = vmul.f32 %v403, 1.442695
        %v405 = vpow.pop %v404
        %v406 = vadd.f32 %v405, 1.0
        %v407 = vrcp.pop %v406
        %v408 = vmul.f32 1.0, %v407
        %v409 = vmul.f32 %v402, %v408
        %v410 = vld [vmem:[#allocation7] sm:$0xff]
        %v411 = vld [vmem:[#allocation7 + $0x8] sm:$0xff]
        %v412 = vld [vmem:[#allocation7 + $0x10] sm:$0xff]
        %v413 = vld [vmem:[#allocation7 + $0x18] sm:$0xff]
        %v414 = vld [vmem:[#allocation7 + $0x20] sm:$0xff]
        %v415 = vld [vmem:[#allocation7 + $0x28] sm:$0xff]
        %v416 = vld [vmem:[#allocation7 + $0x30] sm:$0xff]
        %v417 = vld [vmem:[#allocation7 + $0x38] sm:$0xff]
        %v418 = vld [vmem:[#allocation7 + $0x40] sm:$0xff]
        %v419 = vld [vmem:[#allocation7 + $0x48] sm:$0xff]
        %v420 = vld [vmem:[#allocation7 + $0x50] sm:$0xff]
        %v421 = vld [vmem:[#allocation7 + $0x58] sm:$0xff]
        %v422 = vld [vmem:[#allocation7 + $0x60] sm:$0xff]
        %v423 = vld [vmem:[#allocation7 + $0x68] sm:$0xff]
        %v424 = vld [vmem:[#allocation7 + $0x70] sm:$0xff]
        %v425 = vld [vmem:[#allocation7 + $0x78] sm:$0xff]
        %v426 = vld [vmem:[%s6] sm:$0x1]
        %v428 = vlaneseq
        %v429 = vshrl.u32 %v428, 7
        %v430 = vsub.s32 0, %v429
        %v431 = vrot.slane %v426, %v430
        %433 = vmatprep.subr.mxu0 0.0
        %434 = vmatpush1.msra.mxu0 %v425
        %435 = vmatprep.subr.mxu0 0.0
        %436 = vmatpush1.msra.mxu0 %v424
        %437 = vmatprep.subr.mxu0 0.0
        %438 = vmatpush1.msra.mxu0 %v423
        %439 = vmatprep.subr.mxu0 0.0
        %440 = vmatpush1.msra.mxu0 %v422
        %441 = vmatprep.subr.mxu0 0.0
        %442 = vmatpush1.msra.mxu0 %v421
        %443 = vmatprep.subr.mxu0 0.0
        %444 = vmatpush1.msra.mxu0 %v420
        %445 = vmatprep.subr.mxu0 0.0
        %446 = vmatpush1.msra.mxu0 %v419
        %447 = vmatprep.subr.mxu0 0.0
        %448 = vmatpush1.msra.mxu0 %v418
        %449 = vmatprep.subr.mxu0 0.0
        %450 = vmatpush1.msra.mxu0 %v417
        %451 = vmatprep.subr.mxu0 0.0
        %452 = vmatpush1.msra.mxu0 %v416
        %453 = vmatprep.subr.mxu0 0.0
        %454 = vmatpush1.msra.mxu0 %v415
        %455 = vmatprep.subr.mxu0 0.0
        %456 = vmatpush1.msra.mxu0 %v414
        %457 = vmatprep.subr.mxu0 0.0
        %458 = vmatpush1.msra.mxu0 %v413
        %459 = vmatprep.subr.mxu0 0.0
        %460 = vmatpush1.msra.mxu0 %v412
        %461 = vmatprep.subr.mxu0 0.0
        %462 = vmatpush1.msra.mxu0 %v411
        %463 = vmatprep.subr.mxu0 0.0
        %464 = vmatpush1.msra.mxu0 %v410
        %465 = vmatprep.subr.mxu0 0.0
        %466 = vmatpush2.msra.mxu0 0.0
        %467 = vmatprep.subr.mxu0 0.0
        %468 = vmatpush2.msra.mxu0 0.0
        %469 = vmatprep.subr.mxu0 0.0
        %470 = vmatpush2.msra.mxu0 0.0
        %471 = vmatprep.subr.mxu0 0.0
        %472 = vmatpush2.msra.mxu0 0.0
        %473 = vmatprep.subr.mxu0 0.0
        %474 = vmatpush2.msra.mxu0 0.0
        %475 = vmatprep.subr.mxu0 0.0
        %476 = vmatpush2.msra.mxu0 0.0
        %477 = vmatprep.subr.mxu0 0.0
        %478 = vmatpush2.msra.mxu0 0.0
        %479 = vmatprep.subr.mxu0 0.0
        %480 = vmatpush2.msra.mxu0 0.0
        %481 = vmatprep.subr.mxu0 0.0
        %482 = vmatpush2.msra.mxu0 0.0
        %483 = vmatprep.subr.mxu0 0.0
        %484 = vmatpush2.msra.mxu0 0.0
        %485 = vmatprep.subr.mxu0 0.0
        %486 = vmatpush2.msra.mxu0 0.0
        %487 = vmatprep.subr.mxu0 0.0
        %488 = vmatpush2.msra.mxu0 0.0
        %489 = vmatprep.subr.mxu0 0.0
        %490 = vmatpush2.msra.mxu0 0.0
        %491 = vmatprep.subr.mxu0 0.0
        %492 = vmatpush2.msra.mxu0 0.0
        %493 = vmatprep.subr.mxu0 0.0
        %494 = vmatpush2.msra.mxu0 0.0
        %495 = vmatprep.subr.mxu0 0.0
        %496 = vmatpush2.msra.mxu0 0.0
        %497 = vmatprep.mubr.f32.mxu0 0.0
        %498 = vmatmul.mubr.f32.gmra.mxu0 %v409
        %v499 = vpop.f32.mrf.mxu0
        %v500 = vadd.f32 %v431, %v499
        %v501 = vpop.f32.mrf.mxu0
        %502 = vdwg.mxu0
        %503 = vadd.xlane.f32.xlu0 %v500
        %v504 = vpop.xlane.xlu0 %503
        %v505 = vmul.f32 %v500, %v500
        %506 = vadd.xlane.f32.xlu0 %v505
        %v507 = vpop.xlane.xlu0 %506
        %v508 = vmul.f32 %v504, 0.03125
        %v509 = vmul.f32 %v507, 0.03125
        %v510 = vmul.f32 %v508, %v508
        %v511 = vsub.f32 %v509, %v510
        %v512 = vsub.f32 %v500, %v508
        %v513 = vadd.f32 %v511, 1e-05
        %v514 = vrsqrt.pop %v513
        %v515 = vmul.f32 %v512, %v514
        %v516 = vld [vmem:[%s328] sm:$0x1]
        %v517 = vadd.f32 %v516, 1.0
        %v519 = vlaneseq
        %v520 = vshrl.u32 %v519, 7
        %v521 = vsub.s32 0, %v520
        %v522 = vrot.slane %v517, %v521
        %v524 = vmul.f32 %v515, %v522
        %v525 = vadd.f32 %v373, %v524
        %v526 = vld [vmem:[%s372] sm:$0x1]
        %v528 = vlaneseq
        %v529 = vshrl.u32 %v528, 7
        %v530 = vsub.s32 0, %v529
        %v531 = vrot.slane %v526, %v530
        %v533 = vadd.f32 %v525, %v531
        %534 = vst [vmem:[%s369] sm:$0xff] %v533
        %s535 = sand.u32 %s213, 1
        %s536 = scalar_lea.sflag [#allocation4], %s535
        %s537 = sand.u32 %s213, 1
        %s538 = smul.addr %s537, 8
        %s539 = scalar_lea.vmem [#allocation8], %s538
        // Predicated region
        $region61: #{tpu_custom_call.1} parent=47 // pred_check
          %p540 = pneg %p223
        $region62: #{tpu_custom_call.1} parent=47 // pred_check_branch
          %542 = sbr.rel (%p540) target = $region64
        $region63: #{tpu_custom_call.1} parent=47 // pred_region
          %s544 = ssub.s32 128, 128
          %545 = vsyncadd %s536, %s544
          %s546 = sadd.s32 %s32, %s31
          %s547 = smul.addr %s546, 128
          %s548 = scalar_lea.hbm %s7, %s547
          %s550 = sshll.u32 %s539, 4
          %s551 = int_to_ptr.vmem [resolvable:$true] %s550
          %553 = dma.vmem_to_hbm [thread:$0]  %s551, 128, %s548, %s536
        $region64: #{tpu_custom_call.1} parent=47 // pred_fallthru
          _
      $region48: #{tpu_custom_call.1} parent=5 // pred_fallthru
        _
      %p554 = scmp.le.s32.totalorder 2, %s22
      // Predicated region
      $region65: #{tpu_custom_call.1} parent=5 // pred_check
        %p555 = pneg %p554
      $region66: #{tpu_custom_call.1} parent=5 // pred_check_branch
        %557 = sbr.rel (%p555) target = $region68
      $region67: #{tpu_custom_call.1} parent=5 // pred_region
        %s558 = ssub.s32 %s22, 2
        // Predicated region
        $region69: #{tpu_custom_call.1} parent=67 // pred_check
          %p559 = pneg %p229
        $region70: #{tpu_custom_call.1} parent=67 // pred_check_branch
          %561 = sbr.rel (%p559) target = $region72
        $region71: #{tpu_custom_call.1} parent=67 // pred_region
          %s562 = sand.u32 %s214, 1
          %s563 = scalar_lea.sflag [#allocation4], %s562
          %s564 = sand.u32 %s214, 1
          %s565 = smul.addr %s564, 8
          %s566 = scalar_lea.vmem [#allocation8], %s565
          %567 = dma.done %s563, 128
        $region72: #{tpu_custom_call.1} parent=67 // pred_fallthru
          _
      $region68: #{tpu_custom_call.1} parent=5 // pred_fallthru
        _
    $region6: #{tpu_custom_call.1} parent=1 // loop_footer
      %s26 = sadd.s32 1, %s22
    $region7: #{tpu_custom_call.1} parent=1 // loop_footer_branch
      %21 = sbr.rel target = $region3
    $region8: #{tpu_custom_call.1} parent=1 // loop_exit
      _
    %568 = vsyncpa [#allocation3], 1
    %s569 = scalar_lea.sflag [#allocation3], 1
    %570 = vsyncpa %s569, 1
    %571 = vsyncpa [#allocation6], 1
    %s572 = scalar_lea.sflag [#allocation6], 1
    %573 = vsyncpa %s572, 1
    %574 = vsyncpa [#allocation4], 1
    %s575 = scalar_lea.sflag [#allocation4], 1
    %576 = vsyncpa %s575, 1

</llo_original>
